<compile_context>
chip_gen: v7x
topology: tpu7x:2x2x1
jax: 0.10.0
libtpu: 0.0.40
codegen_flags: <defaults>
</compile_context>

<pallas_src>
import functools
import inspect

import jax
import jax.numpy as jnp
from jax.experimental import pallas as pl
from jax.experimental.pallas import tpu as pltpu

LANES = 128
SUBLANES = 8


def _round_up(a, b):
    return (a + b - 1) // b * b


def _chip_defaults():
    """(n_splits, max_tile_rows, core_parallel) derived from the local TPU generation."""
    kind = ""
    try:
        kind = jax.devices()[0].device_kind.lower()
    except Exception:
        pass
    if "v7" in kind or "7x" in kind:
        # 2 TensorCores/chip, ~3.2 TB/s HBM: split rows across cores, use bigger tiles.
        return 2, 4096, True
    if "v4" in kind or "v5p" in kind:
        # Megacore parts: a plain 'parallel' leading axis already shards across halves.
        return 2, 1024, False
    # v5e / v6e: single TensorCore -> no split axis; 512 KiB fp32 streaming tiles.
    return 1, 1024, False


def _min_sublanes(dtype):
    # Packed dtypes need proportionally taller tiles: (8,128) f32, (16,128) bf16, (32,128) i8.
    return {1: 32, 2: 16, 4: 8}.get(jnp.dtype(dtype).itemsize, 8)


def _keep_native_dtype(a):
    # Stream logits/targets in their native dtype (cast to f32 on the VPU in-kernel).
    # Only bools are converted (cheap 1B->1B) since i1 is not a vector dtype.
    if a.dtype == jnp.bool_:
        return a.astype(jnp.int8)
    return a


def _bce_sum_kernel(y_true_ref, y_pred_ref, out_ref, acc_ref, *,
                    n_rows_valid, tile_rows, tiles_per_split, acc_rows):
    """One (tile_rows, 128) tile of stable BCE-with-logits, folded into a small
    (acc_rows, 128) VMEM accumulator (read/written once per tile, not per vreg)."""
    s = pl.program_id(0)              # split (one per TensorCore on v7x)
    j = pl.program_id(1)              # row-tile within the split (reduction axis)

    @pl.when(j == 0)
    def _():
        acc_ref[...] = jnp.zeros_like(acc_ref)

    x = y_pred_ref[...].astype(jnp.float32)   # logits (in-kernel cast; VPU slot has slack)
    y = y_true_ref[...].astype(jnp.float32)   # targets
    # Numerically stable BCEWithLogits: max(x,0) - x*y + log1p(exp(-|x|))
    loss = jnp.maximum(x, 0.0) - x * y + jnp.log1p(jnp.exp(-jnp.abs(x)))

    base_row = (s * tiles_per_split + j) * tile_rows    # logical (unclamped) tile origin

    def _accumulate(vals):
        if tile_rows == acc_rows:
            acc_ref[...] += vals
        else:  # fold 8-row sublane groups into the single-vreg accumulator (same VPU adds)
            acc_ref[...] += vals.reshape(tile_rows // acc_rows, acc_rows, LANES).sum(axis=0)

    @pl.when(base_row + tile_rows <= n_rows_valid)
    def _():                                   # fully-valid tile: plain VPU adds
        _accumulate(loss)

    @pl.when(base_row + tile_rows > n_rows_valid)
    def _():                                   # ragged / duplicated tile: exact row mask
        row = jax.lax.broadcasted_iota(jnp.int32, (tile_rows, LANES), 0)
        # Row-granular compare (no flat int32 index -> no overflow on huge inputs); keep
        # the select form so garbage/NaN rows in the overrun region cannot propagate.
        _accumulate(jnp.where(base_row + row < n_rows_valid, loss, 0.0))

    @pl.when(j == pl.num_programs(1) - 1)
    def _():                                   # one lane-dense (acc_rows,128) store per split
        out_ref[...] = acc_ref[...].reshape(out_ref.shape)


def _make_input_spec(tile_rows, index_map, deep_buffer):
    # 3-deep input buffering hides DMA turnaround on this DMA-bound kernel; VMEM headroom
    # is large (<=12 MiB at tile_rows=4096). Guarded for older Pallas APIs.
    if deep_buffer and hasattr(pl, "Buffered"):
        try:
            if "pipeline_mode" in inspect.signature(pl.BlockSpec).parameters:
                return pl.BlockSpec((tile_rows, LANES), index_map,
                                    pipeline_mode=pl.Buffered(3))
        except (TypeError, ValueError):
            pass
    return pl.BlockSpec((tile_rows, LANES), index_map)


@functools.partial(jax.jit, static_argnames=("max_tile_rows", "n_splits", "core_parallel"))
def _bce_sum_impl(y_true, y_pred, *, max_tile_rows, n_splits, core_parallel):
    n = y_true.size
    if n == 0:
        return jnp.float32(0.0)

    yt = _keep_native_dtype(y_true).reshape(-1)
    yp = _keep_native_dtype(y_pred).reshape(-1)

    rows = n // LANES                 # lane-aligned body handled by the kernel
    body = rows * LANES
    total = jnp.float32(0.0)

    if rows > 0:
        # No jnp.pad: when n is lane-aligned this reshape is a free view of the contiguous
        # data; otherwise only the aligned prefix is sliced for the kernel.
        yt2 = (yt if body == n else yt[:body]).reshape(rows, LANES)
        yp2 = (yp if body == n else yp[:body]).reshape(rows, LANES)

        min_sub = max(_min_sublanes(yt2.dtype), _min_sublanes(yp2.dtype))
        tile_rows = min(max_tile_rows, rows)
        if tile_rows < rows and tile_rows % min_sub != 0:
            tile_rows = min(rows, _round_up(tile_rows, min_sub))
        row_tiles = pl.cdiv(rows, tile_rows)
        splits = n_splits if row_tiles >= n_splits else 1
        tiles_per_split = pl.cdiv(row_tiles, splits)
        acc_rows = SUBLANES if tile_rows % SUBLANES == 0 else tile_rows

        kernel = functools.partial(
            _bce_sum_kernel, n_rows_valid=rows, tile_rows=tile_rows,
            tiles_per_split=tiles_per_split, acc_rows=acc_rows)

        def in_map(si, ji):
            # Clamp so a short last split never indexes an out-of-range block; the
            # duplicated tile's contribution is zeroed by the in-kernel row mask.
            return (jnp.minimum(si * tiles_per_split + ji, row_tiles - 1), 0)

        deep = splits * tiles_per_split >= 4
        in_specs = [_make_input_spec(tile_rows, in_map, deep),
                    _make_input_spec(tile_rows, in_map, deep)]

        if splits > 1 and core_parallel and hasattr(pltpu, "CORE_PARALLEL"):
            # v7x: actually shard the split axis across the two TensorCores.
            dims = (pltpu.CORE_PARALLEL, getattr(pltpu, "ARBITRARY", "arbitrary"))
        else:
            dims = ("parallel", "arbitrary")

        cost = pl.CostEstimate(
            flops=5 * body,
            transcendentals=2 * body,
            bytes_accessed=(yt2.size * yt2.dtype.itemsize
                            + yp2.size * yp2.dtype.itemsize
                            + splits * acc_rows * LANES * 4))

        partials = pl.pallas_call(
            kernel,
            out_shape=jax.ShapeDtypeStruct((splits, acc_rows, LANES), jnp.float32),
            grid_spec=pltpu.PrefetchScalarGridSpec(
                num_scalar_prefetch=0,
                grid=(splits, tiles_per_split),
                in_specs=in_specs,
                out_specs=pl.BlockSpec((1, acc_rows, LANES), lambda si, ji: (si, 0, 0)),
                scratch_shapes=[pltpu.VMEM((acc_rows, LANES), jnp.float32)],
            ),
            compiler_params=pltpu.CompilerParams(dimension_semantics=dims),
            cost_estimate=cost,
        )(yt2, yp2)
        total = jnp.sum(partials)

    if body != n:
        # <128-element ragged tail: trivial XLA expression; avoids copying/padding the full
        # arrays just to make the kernel view lane-aligned.
        tx = yp[body:].astype(jnp.float32)
        ty = yt[body:].astype(jnp.float32)
        total = total + jnp.sum(jnp.maximum(tx, 0.0) - tx * ty
                                + jnp.log1p(jnp.exp(-jnp.abs(tx))))
    return total


def _bce_with_logits_sum(y_true, y_pred, max_tile_rows=None, n_splits=None):
    d_splits, d_tile, core_parallel = _chip_defaults()
    return _bce_sum_impl(
        y_true, y_pred,
        max_tile_rows=int(max_tile_rows if max_tile_rows is not None else d_tile),
        n_splits=int(n_splits if n_splits is not None else d_splits),
        core_parallel=bool(core_parallel))


def detection_loss(y_true, y_pred, reduction="sum"):
    total = _bce_with_logits_sum(y_true, y_pred)
    if reduction == "sum":
        return total
    if reduction == "mean":
        return total / jnp.float32(y_true.size)
    # TODO(synk): reduction='none' (elementwise loss output) not implemented in this path.
    raise NotImplementedError(f"reduction={reduction!r}")


class TotalLoss:
    """JAX/Pallas port of criterion/total.py::TotalLoss."""

    def __init__(self, weight=1.0):
        self.weight = weight

    def __call__(self, y_true, y_pred, reduction="sum"):
        LD = detection_loss(y_true, y_pred, reduction)
        return (self.weight * LD, LD)


def _bce_ref(y_true, y_pred):
    x = y_pred.astype(jnp.float32)
    y = y_true.astype(jnp.float32)
    return jnp.sum(jnp.maximum(x, 0.0) - x * y + jnp.log1p(jnp.exp(-jnp.abs(x))))


if __name__ == "__main__":
    key = jax.random.PRNGKey(0)
    ks = jax.random.split(key, 10)

    # 1) Detection-style tensors: batch=2, channels=4, spatial=16x16 (lane-aligned).
    shape = (2, 4, 16, 16)
    y_pred = jax.random.normal(ks[0], shape, dtype=jnp.float32)             # logits
    y_true = (jax.random.uniform(ks[1], shape) > 0.5).astype(jnp.float32)   # {0,1}
    loss_fn = TotalLoss(weight=1.0)
    weighted, ld = loss_fn(y_true, y_pred, reduction="sum")
    jax.block_until_ready((weighted, ld))
    ref = _bce_ref(y_true, y_pred)
    assert jnp.allclose(ld, ref, rtol=1e-5, atol=1e-4), (ld, ref)
    assert jnp.allclose(weighted, loss_fn.weight * ref, rtol=1e-5, atol=1e-4)

    # 2) Non-lane-aligned element count -> kernel on the 128-aligned prefix + XLA tail.
    shape2 = (2, 3, 7, 11)   # 462 elements
    yp2 = jax.random.normal(ks[2], shape2, dtype=jnp.float32)
    yt2 = (jax.random.uniform(ks[3], shape2) > 0.5).astype(jnp.float32)
    got2 = _bce_with_logits_sum(yt2, yp2)
    jax.block_until_ready(got2)
    assert jnp.allclose(got2, _bce_ref(yt2, yp2), rtol=1e-5, atol=1e-4), got2

    # 3) Forced 2-way split + small tiles: exercises the duplicated clamped tile, the
    #    single-vreg accumulator fold and (when available) Buffered(3) input pipelining.
    shape3 = (3, 4, 16, 16)  # 3072 elements -> 24 rows, 3 tiles of 8 rows, 2 splits
    yp3 = jax.random.normal(ks[4], shape3, dtype=jnp.float32)
    yt3 = (jax.random.uniform(ks[5], shape3) > 0.5).astype(jnp.float32)
    got3 = _bce_with_logits_sum(yt3, yp3, max_tile_rows=8, n_splits=2)
    jax.block_until_ready(got3)
    assert jnp.allclose(got3, _bce_ref(yt3, yp3), rtol=1e-5, atol=1e-4), got3

    # 4) Rows not a multiple of the tile -> ragged trailing block masked in-kernel.
    shape4 = (5, 4, 128)     # 2560 elements -> 20 rows, tiles of 8 rows
    yp4 = jax.random.normal(ks[6], shape4, dtype=jnp.float32)
    yt4 = (jax.random.uniform(ks[7], shape4) > 0.5).astype(jnp.float32)
    got4 = _bce_with_logits_sum(yt4, yp4, max_tile_rows=8)
    jax.block_until_ready(got4)
    assert jnp.allclose(got4, _bce_ref(yt4, yp4), rtol=1e-5, atol=1e-4), got4

    # 5) Native narrow dtypes streamed straight to the kernel: bool targets (-> int8
    #    stream) and bf16 logits; the f32 cast happens on the VPU inside the kernel.
    shape5 = (4, 4, 16, 16)  # 4096 elements -> 32 rows
    yp5 = jax.random.normal(ks[8], shape5, dtype=jnp.float32).astype(jnp.bfloat16)
    yt5 = jax.random.uniform(ks[9], shape5) > 0.5            # bool targets
    got5 = _bce_with_logits_sum(yt5, yp5)
    jax.block_until_ready(got5)
    assert jnp.allclose(got5, _bce_ref(yt5, yp5), rtol=1e-5, atol=1e-3), got5

    print("KERNEL_OK")
</pallas_src>

<mosaic_0001>
module attributes {stable_mosaic.version = 11 : i64} {
  func.func @_bce_sum_kernel(%arg0: i32, %arg1: i32, %arg2: memref<16x128xf32, #tpu.memory_space<vmem>>, %arg3: memref<16x128xf32, #tpu.memory_space<vmem>>, %arg4: memref<1x8x128xf32, #tpu.memory_space<vmem>>, %arg5: memref<8x128xf32, #tpu.memory_space<vmem>>) attributes {dimension_semantics = [#tpu.dimension_semantics<parallel>, #tpu.dimension_semantics<arbitrary>], iteration_bounds = array<i64: 1, 1>, scalar_prefetch = 0 : i64, scratch_operands = 1 : i64, tpu.core_type = #tpu.core_type<tc>, window_params = [{transform_indices = @transform_0, window_bounds = array<i64: 16, 128>}, {transform_indices = @transform_1, window_bounds = array<i64: 16, 128>}, {transform_indices = @transform_2, window_bounds = array<i64: 1, 8, 128>}]} {
    %c0_i32 = arith.constant 0 : i32
    %0 = arith.cmpi eq, %arg1, %c0_i32 : i32
    %1 = arith.extui %0 : i1 to i32
    %c0_i32_0 = arith.constant 0 : i32
    %2 = arith.cmpi ne, %1, %c0_i32_0 : i32
    scf.if %2 {
      %cst_13 = arith.constant 0.000000e+00 : f32
      %29 = vector.broadcast %cst_13 : f32 to vector<8x128xf32>
      %c0_14 = arith.constant 0 : index
      %c0_15 = arith.constant 0 : index
      %30 = vector.load %arg5[%c0_14, %c0_15] : memref<8x128xf32, #tpu.memory_space<vmem>>, vector<8x128xf32>
      tpu.vector_store %arg5[%c0_14, %c0_15], %29 {strides = array<i32>} : memref<8x128xf32, #tpu.memory_space<vmem>>, vector<8x128xf32>,
    } else {
    }
    %c0 = arith.constant 0 : index
    %c0_1 = arith.constant 0 : index
    %3 = vector.load %arg3[%c0, %c0_1] : memref<16x128xf32, #tpu.memory_space<vmem>>, vector<16x128xf32>
    %c0_2 = arith.constant 0 : index
    %c0_3 = arith.constant 0 : index
    %4 = vector.load %arg2[%c0_2, %c0_3] : memref<16x128xf32, #tpu.memory_space<vmem>>, vector<16x128xf32>
    %cst = arith.constant 0.000000e+00 : f32
    %5 = vector.broadcast %cst : f32 to vector<16x128xf32>
    %6 = arith.maximumf %3, %5 : vector<16x128xf32>
    %7 = arith.mulf %3, %4 : vector<16x128xf32>
    %8 = arith.subf %6, %7 : vector<16x128xf32>
    %9 = math.absf %3 : vector<16x128xf32>
    %cst_4 = arith.constant 0.000000e+00 : f32
    %10 = vector.broadcast %cst_4 : f32 to vector<16x128xf32>
    %11 = arith.subf %10, %9 : vector<16x128xf32>
    %12 = math.exp %11 : vector<16x128xf32>
    %13 = math.log1p %12 : vector<16x128xf32>
    %14 = arith.addf %8, %13 : vector<16x128xf32>
    %c1_i32 = arith.constant 1 : i32
    %15 = arith.muli %arg0, %c1_i32 : i32
    %16 = arith.addi %15, %arg1 : i32
    %c16_i32 = arith.constant 16 : i32
    %17 = arith.muli %16, %c16_i32 : i32
    %c16_i32_5 = arith.constant 16 : i32
    %18 = arith.addi %17, %c16_i32_5 : i32
    %c16_i32_6 = arith.constant 16 : i32
    %19 = arith.cmpi sle, %18, %c16_i32_6 : i32
    %20 = arith.extui %19 : i1 to i32
    %c0_i32_7 = arith.constant 0 : i32
    %21 = arith.cmpi ne, %20, %c0_i32_7 : i32
    scf.if %21 {
      %c0_13 = arith.constant 0 : index
      %c0_14 = arith.constant 0 : index
      %29 = vector.load %arg5[%c0_13, %c0_14] : memref<8x128xf32, #tpu.memory_space<vmem>>, vector<8x128xf32>
      %30 = vector.shape_cast %14 : vector<16x128xf32> to vector<2x8x128xf32>
      %cst_15 = arith.constant dense<0.000000e+00> : vector<8x128xf32>
      %31 = vector.multi_reduction <add>, %30, %cst_15 [0] : vector<2x8x128xf32> to vector<8x128xf32>
      %32 = arith.addf %29, %31 : vector<8x128xf32>
      %c0_16 = arith.constant 0 : index
      %c0_17 = arith.constant 0 : index
      %33 = vector.load %arg5[%c0_16, %c0_17] : memref<8x128xf32, #tpu.memory_space<vmem>>, vector<8x128xf32>
      tpu.vector_store %arg5[%c0_16, %c0_17], %32 {strides = array<i32>} : memref<8x128xf32, #tpu.memory_space<vmem>>, vector<8x128xf32>,
    } else {
    }
    %c16_i32_8 = arith.constant 16 : i32
    %22 = arith.addi %17, %c16_i32_8 : i32
    %c16_i32_9 = arith.constant 16 : i32
    %23 = arith.cmpi sgt, %22, %c16_i32_9 : i32
    %24 = arith.extui %23 : i1 to i32
    %c0_i32_10 = arith.constant 0 : i32
    %25 = arith.cmpi ne, %24, %c0_i32_10 : i32
    scf.if %25 {
      %29 = tpu.iota {dimensions = array<i32: 0>} : vector<16x128xi32>
      %30 = vector.broadcast %17 : i32 to vector<16x128xi32>
      %31 = arith.addi %30, %29 : vector<16x128xi32>
      %c16_i32_13 = arith.constant 16 : i32
      %32 = vector.broadcast %c16_i32_13 : i32 to vector<16x128xi32>
      %33 = arith.cmpi slt, %31, %32 : vector<16x128xi32>
      %cst_14 = arith.constant 0.000000e+00 : f32
      %34 = vector.broadcast %cst_14 : f32 to vector<16x128xf32>
      %35 = arith.select %33, %14, %34 : vector<16x128xi1>, vector<16x128xf32>
      %c0_15 = arith.constant 0 : index
      %c0_16 = arith.constant 0 : index
      %36 = vector.load %arg5[%c0_15, %c0_16] : memref<8x128xf32, #tpu.memory_space<vmem>>, vector<8x128xf32>
      %37 = vector.shape_cast %35 : vector<16x128xf32> to vector<2x8x128xf32>
      %cst_17 = arith.constant dense<0.000000e+00> : vector<8x128xf32>
      %38 = vector.multi_reduction <add>, %37, %cst_17 [0] : vector<2x8x128xf32> to vector<8x128xf32>
      %39 = arith.addf %36, %38 : vector<8x128xf32>
      %c0_18 = arith.constant 0 : index
      %c0_19 = arith.constant 0 : index
      %40 = vector.load %arg5[%c0_18, %c0_19] : memref<8x128xf32, #tpu.memory_space<vmem>>, vector<8x128xf32>
      tpu.vector_store %arg5[%c0_18, %c0_19], %39 {strides = array<i32>} : memref<8x128xf32, #tpu.memory_space<vmem>>, vector<8x128xf32>,
    } else {
    }
    %c0_i32_11 = arith.constant 0 : i32
    %26 = arith.cmpi eq, %arg1, %c0_i32_11 : i32
    %27 = arith.extui %26 : i1 to i32
    %c0_i32_12 = arith.constant 0 : i32
    %28 = arith.cmpi ne, %27, %c0_i32_12 : i32
    scf.if %28 {
      %c0_13 = arith.constant 0 : index
      %c0_14 = arith.constant 0 : index
      %29 = vector.load %arg5[%c0_13, %c0_14] : memref<8x128xf32, #tpu.memory_space<vmem>>, vector<8x128xf32>
      %30 = vector.shape_cast %29 : vector<8x128xf32> to vector<1x8x128xf32>
      %c0_15 = arith.constant 0 : index
      %c0_16 = arith.constant 0 : index
      %c0_17 = arith.constant 0 : index
      %31 = vector.load %arg4[%c0_15, %c0_16, %c0_17] : memref<1x8x128xf32, #tpu.memory_space<vmem>>, vector<1x8x128xf32>
      tpu.vector_store %arg4[%c0_15, %c0_16, %c0_17], %30 {strides = array<i32>} : memref<1x8x128xf32, #tpu.memory_space<vmem>>, vector<1x8x128xf32>,
    } else {
    }
    return
  }
  func.func @transform_0(%arg0: i32, %arg1: i32) -> (i32, i32) {
    %c1_i32 = arith.constant 1 : i32
    %0 = arith.muli %arg0, %c1_i32 : i32
    %1 = arith.addi %0, %arg1 : i32
    %c0_i32 = arith.constant 0 : i32
    %2 = arith.minsi %1, %c0_i32 : i32
    %c0_i32_0 = arith.constant 0 : i32
    %c0_i32_1 = arith.constant 0 : i32
    return %2, %c0_i32_0 : i32, i32
  }
  func.func @transform_1(%arg0: i32, %arg1: i32) -> (i32, i32) {
    %c1_i32 = arith.constant 1 : i32
    %0 = arith.muli %arg0, %c1_i32 : i32
    %1 = arith.addi %0, %arg1 : i32
    %c0_i32 = arith.constant 0 : i32
    %2 = arith.minsi %1, %c0_i32 : i32
    %c0_i32_0 = arith.constant 0 : i32
    %c0_i32_1 = arith.constant 0 : i32
    return %2, %c0_i32_0 : i32, i32
  }
  func.func @transform_2(%arg0: i32, %arg1: i32) -> (i32, i32, i32) {
    %c0_i32 = arith.constant 0 : i32
    %c0_i32_0 = arith.constant 0 : i32
    %c0_i32_1 = arith.constant 0 : i32
    return %arg0, %c0_i32, %c0_i32_0 : i32, i32, i32
  }
}

</mosaic_0001>

<llo_original>
// kernel: _bce_sum_impl.1
$region0: #{_bce_sum_impl.1}
  #allocation0 [shape = 'u32[]', space=smem, size = 0x4, offset = 0x4, fixed_abs, tag = 'smem constant byte address 0x4 - core index']
  #allocation1 [shape = 'u32[144,128]{1,0:T(1,128)}', space=vmem, size = 0x12000, scoped, tag = 'internal scratch']
  #allocation2 [shape = 'f32[8,128]{1,0:T(8,128)}', space=vmem, size = 0x1000, scoped, tag = 'scratch operand']
  %s0 = inlined_call_operand.vmem [shape: f32[16,128], index: 0, kind: input, shape index: {}]
  %s1 = inlined_call_operand.vmem [shape: f32[16,128], index: 1, kind: input, shape index: {}]
  %s2 = inlined_call_operand.vmem [shape: f32[1,8,128], index: 2, kind: output, shape index: {}]
  %s3 = sld [smem:[#allocation0]]
  $region34: #{_bce_sum_impl.1} parent=0
    _
  %s5 = ssub.s32 1, %s3
  %s6 = scalar_select 0, %s5, %s3
  // Predicated region
  $region2: #{_bce_sum_impl.1} parent=0 // pred_check
    _
  $region3: #{_bce_sum_impl.1} parent=0 // pred_check_branch
    %8 = sbr.rel (0) target = $region5
  $region4: #{_bce_sum_impl.1} parent=0 // pred_region
    %s9 = sadd.s32 0, 0
    %p10 = scmp.lt.s32.totalorder %s9, 0
    %s11 = scalar_select %p10, %s9, 0
    %s12 = smul.u32 2, %s11
    %p13 = scmp.lt.s32.totalorder %s12, 1
    %s14 = scalar_select %p13, %s12, 1
    %s15 = smul.addr %s14, 8
    %s16 = scalar_lea.vmem %s0, %s15
    %s17 = sadd.s32 0, 0
    %p18 = scmp.lt.s32.totalorder %s17, 0
    %s19 = scalar_select %p18, %s17, 0
    %s20 = smul.u32 2, %s19
  $region5: #{_bce_sum_impl.1} parent=0 // pred_fallthru
    _
  // Predicated region
  $region6: #{_bce_sum_impl.1} parent=0 // pred_check
    _
  $region7: #{_bce_sum_impl.1} parent=0 // pred_check_branch
    %22 = sbr.rel (0) target = $region9
  $region8: #{_bce_sum_impl.1} parent=0 // pred_region
    %s23 = sadd.s32 0, 0
    %p24 = scmp.lt.s32.totalorder %s23, 0
    %s25 = scalar_select %p24, %s23, 0
    %s26 = smul.u32 2, %s25
    %p27 = scmp.lt.s32.totalorder %s26, 1
    %s28 = scalar_select %p27, %s26, 1
    %s29 = smul.addr %s28, 8
    %s30 = scalar_lea.vmem %s1, %s29
    %s31 = sadd.s32 0, 0
    %p32 = scmp.lt.s32.totalorder %s31, 0
    %s33 = scalar_select %p32, %s31, 0
    %s34 = smul.u32 2, %s33
  $region9: #{_bce_sum_impl.1} parent=0 // pred_fallthru
    _
  %s35 = sadd.s32 0, 0
  %p36 = scmp.lt.s32.totalorder %s35, 0
  %s37 = scalar_select %p36, %s35, 0
  %s38 = smul.u32 2, %s37
  %p39 = scmp.lt.s32.totalorder %s38, 1
  %s40 = scalar_select %p39, %s38, 1
  %s41 = smul.addr %s40, 8
  %s42 = scalar_lea.vmem %s0, %s41
  %s43 = sadd.s32 0, 0
  %p44 = scmp.lt.s32.totalorder %s43, 0
  %s45 = scalar_select %p44, %s43, 0
  %s46 = smul.u32 2, %s45
  %p47 = scmp.lt.s32.totalorder %s46, 1
  %s48 = scalar_select %p47, %s46, 1
  %s49 = smul.addr %s48, 8
  %s50 = scalar_lea.vmem %s1, %s49
  %s51 = sadd.s32 0, 0
  %p52 = scmp.lt.s32.totalorder %s51, 0
  %s53 = scalar_select %p52, %s51, 0
  %s54 = smul.u32 2, %s53
  %p55 = scmp.lt.s32.totalorder %s54, 1
  %s56 = scalar_select %p55, %s54, 1
  %s57 = smul.addr %s56, 8
  %s58 = scalar_lea.vmem %s0, %s57
  %s59 = sadd.s32 0, 0
  %p60 = scmp.lt.s32.totalorder %s59, 0
  %s61 = scalar_select %p60, %s59, 0
  %s62 = smul.u32 2, %s61
  %s63 = sadd.s32 0, 0
  %p64 = scmp.lt.s32.totalorder %s63, 0
  %s65 = scalar_select %p64, %s63, 0
  %s66 = smul.u32 2, %s65
  %p67 = scmp.lt.s32.totalorder %s66, 1
  %s68 = scalar_select %p67, %s66, 1
  %s69 = smul.addr %s68, 8
  %s70 = scalar_lea.vmem %s1, %s69
  %s71 = sadd.s32 0, 0
  %p72 = scmp.lt.s32.totalorder %s71, 0
  %s73 = scalar_select %p72, %s71, 0
  %s74 = smul.u32 2, %s73
  %p75 = scmp.eq.s32.totalorder 0, 0
  // Predicated region
  $region10: #{_bce_sum_impl.1} parent=0 // pred_check
    %p76 = pneg %p75
  $region11: #{_bce_sum_impl.1} parent=0 // pred_check_branch
    %78 = sbr.rel (%p76) target = $region13
  $region12: #{_bce_sum_impl.1} parent=0 // pred_region
    %79 = vst [vmem:[#allocation2] sm:$0xff] 0.0
  $region13: #{_bce_sum_impl.1} parent=0 // pred_fallthru
    _
  %v80 = vld [vmem:[%s70] sm:$0xff]
  %v81 = vld [vmem:[%s70 + $0x8] sm:$0xff]
  %v82 = vld [vmem:[%s58] sm:$0xff]
  %v83 = vld [vmem:[%s58 + $0x8] sm:$0xff]
  %v84 = vmax.f32 %v80, 0.0
  %v85 = vmax.f32 %v81, 0.0
  %v86 = vmul.f32 %v80, %v82
  %v87 = vmul.f32 %v81, %v83
  %v88 = vsub.f32 %v84, %v86
  %v89 = vsub.f32 %v85, %v87
  %v90 = vand.u32 2147483647, %v80
  %v91 = vand.u32 2147483647, %v81
  %v92 = vsub.f32 0.0, %v90
  %v93 = vsub.f32 0.0, %v91
  %v94 = vmul.f32 %v92, 1.442695
  %v95 = vpow.pop %v94
  %v96 = vmul.f32 %v93, 1.442695
  %v97 = vpow.pop %v96
  %v98 = vadd.f32 %v95, 1.0
  %v99 = vlog2.pop %v98
  %v100 = vmul.f32 %v99, 0.6931472
  %v101 = vmul.f32 -0.5, %v95
  %v102 = vadd.f32 %v101, 1.0
  %v103 = vmul.f32 %v102, %v95
  %v104 = vand.u32 2147483647, %v95
  %vm105 = vcmp.lt.f32.partialorder %v104, 0.0004427343
  %v106 = vsel %vm105, %v103, %v100
  %v107 = vadd.f32 %v97, 1.0
  %v108 = vlog2.pop %v107
  %v109 = vmul.f32 %v108, 0.6931472
  %v110 = vmul.f32 -0.5, %v97
  %v111 = vadd.f32 %v110, 1.0
  %v112 = vmul.f32 %v111, %v97
  %v113 = vand.u32 2147483647, %v97
  %vm114 = vcmp.lt.f32.partialorder %v113, 0.0004427343
  %v115 = vsel %vm114, %v112, %v109
  %v116 = vadd.f32 %v88, %v106
  %v117 = vadd.f32 %v89, %v115
  %s118 = sadd.s32 0, 0
  %s119 = smul.u32 %s118, 16
  %s120 = sadd.s32 %s119, 16
  %p121 = scmp.le.s32.totalorder %s120, 16
  // Predicated region
  $region14: #{_bce_sum_impl.1} parent=0 // pred_check
    %p122 = pneg %p121
  $region15: #{_bce_sum_impl.1} parent=0 // pred_check_branch
    %124 = sbr.rel (%p122) target = $region17
  $region16: #{_bce_sum_impl.1} parent=0 // pred_region
    %v125 = vld [vmem:[#allocation2] sm:$0xff]
    %v126 = vadd.f32 %v116, %v117
    %v127 = vadd.f32 %v125, %v126
    %128 = vst [vmem:[#allocation2] sm:$0xff] %v127
  $region17: #{_bce_sum_impl.1} parent=0 // pred_fallthru
    _
  %p129 = scmp.gt.s32.totalorder %s120, 16
  // Predicated region
  $region18: #{_bce_sum_impl.1} parent=0 // pred_check
    %p130 = pneg %p129
  $region19: #{_bce_sum_impl.1} parent=0 // pred_check_branch
    %132 = sbr.rel (%p130) target = $region21
  $region20: #{_bce_sum_impl.1} parent=0 // pred_region
    %v133 = vlaneseq
    %v134 = vshrl.u32 %v133, 7
    %v135 = vadd.s32 %v134, 8
    %v136 = vstv %s119
    %v137 = vadd.s32 %v136, %v134
    %v138 = vadd.s32 %v136, %v135
    %vm139 = vcmp.lt.s32.totalorder %v137, 16
    %vm140 = vcmp.lt.s32.totalorder %v138, 16
    %v141 = vsel %vm139, %v116, 0.0
    %v142 = vsel %vm140, %v117, 0.0
    %v143 = vld [vmem:[#allocation2] sm:$0xff]
    %v144 = vadd.f32 %v141, %v142
    %v145 = vadd.f32 %v143, %v144
    %146 = vst [vmem:[#allocation2] sm:$0xff] %v145
  $region21: #{_bce_sum_impl.1} parent=0 // pred_fallthru
    _
  // Predicated region
  $region22: #{_bce_sum_impl.1} parent=0 // pred_check
    %p147 = pneg %p75
  $region23: #{_bce_sum_impl.1} parent=0 // pred_check_branch
    %149 = sbr.rel (%p147) target = $region25
  $region24: #{_bce_sum_impl.1} parent=0 // pred_region
    %v150 = vld [vmem:[#allocation2] sm:$0xff]
    %151 = vst [vmem:[%s2] sm:$0xff] %v150
  $region25: #{_bce_sum_impl.1} parent=0 // pred_fallthru
    _
  // Predicated region
  $region26: #{_bce_sum_impl.1} parent=0 // pred_check
    _
  $region27: #{_bce_sum_impl.1} parent=0 // pred_check_branch
    %153 = sbr.rel (0) target = $region29
  $region28: #{_bce_sum_impl.1} parent=0 // pred_region
    _
  $region29: #{_bce_sum_impl.1} parent=0 // pred_fallthru
    _
  // Predicated region
  $region30: #{_bce_sum_impl.1} parent=0 // pred_check
    _
  $region31: #{_bce_sum_impl.1} parent=0 // pred_check_branch
    %155 = sbr.rel (0) target = $region33
  $region32: #{_bce_sum_impl.1} parent=0 // pred_region
    _
  $region33: #{_bce_sum_impl.1} parent=0 // pred_fallthru
    _

</llo_original>
